<compile_context>
chip_gen: v7x
topology: tpu7x:2x2x1
jax: 0.10.0
libtpu: 0.0.40
codegen_flags: <defaults>
</compile_context>

<pallas_src>
import functools
import math

import jax
import jax.numpy as jnp
from jax.experimental import pallas as pl
from jax.experimental.pallas import tpu as pltpu


def sublayer_connection_kernel(x_ref, a2_ref, b2_ref, *rest, eps, sublayer_fn):
    """Fused pre-LayerNorm -> sublayer -> residual add for one row tile.

    x_ref:   (TM, D)  input rows
    a2_ref:  (1, D)   LayerNorm scale (a_2)
    b2_ref:  (1, D)   LayerNorm shift (b_2)
    rest:    (*param_refs, out_ref) — sublayer parameter refs, then output ref
    """
    n_params = len(rest) - 1
    param_refs = rest[:n_params]
    out_ref = rest[-1]

    x = x_ref[...].astype(jnp.float32)                      # (TM, D)
    d = x.shape[-1]

    mean = jnp.mean(x, axis=-1, keepdims=True)
    xc = x - mean
    # torch.Tensor.std() is the *unbiased* std (divides by D - 1).
    var = jnp.sum(xc * xc, axis=-1, keepdims=True) * (1.0 / (d - 1))
    std = jnp.sqrt(var)
    normed = a2_ref[...] * xc / (std + eps) + b2_ref[...]   # (TM, D)

    # Arbitrary row-wise sublayer, traced inside the kernel (stays fused).
    y = sublayer_fn(normed, *(r[...] for r in param_refs))

    # TODO(synk): nn.Dropout in *training* mode would need pltpu.prng_seed /
    # stateful_bernoulli + 1/(1-p) scaling; at inference dropout is identity.
    out_ref[...] = (x + y.astype(jnp.float32)).astype(out_ref.dtype)


def _choose_row_tile(n_rows, cap=1024):
    """Largest tile <= cap that divides n_rows, preferring multiples of 8."""
    if n_rows <= cap:
        return n_rows
    best_mult8 = 0
    t = 8
    while t <= cap:
        if n_rows % t == 0:
            best_mult8 = t
        t += 8
    if best_mult8:
        return best_mult8
    for t in range(cap, 0, -1):
        if n_rows % t == 0:
            return t
    return n_rows


def sublayer_connection_forward(x, a_2, b_2, sublayer_fn, sublayer_params=(),
                                *, eps=1e-6, row_tile_cap=1024):
    """x: (..., D); a_2, b_2: (D,); sublayer_fn(row_tile, *params) -> row_tile."""
    orig_shape = x.shape
    D = orig_shape[-1]
    N = math.prod(orig_shape[:-1])

    x2 = x.reshape(N, D)
    a2 = a_2.reshape(1, D).astype(jnp.float32)
    b2 = b_2.reshape(1, D).astype(jnp.float32)

    tm = _choose_row_tile(N, row_tile_cap)
    grid = (N // tm,)

    param_specs = [
        pl.BlockSpec(p.shape, lambda i, _nd=p.ndim: (0,) * _nd)
        for p in sublayer_params
    ]

    # Explicit VMEM budget: 2x double-buffered (tm, D) tiles (in + out),
    # LayerNorm params, resident sublayer params, plus headroom.
    tile_bytes = tm * D * 4
    param_bytes = sum(int(p.size) * p.dtype.itemsize for p in sublayer_params)
    vmem_budget = 4 * tile_bytes + 2 * D * 4 + param_bytes + (4 << 20)
    vmem_budget = int(min(max(vmem_budget, 16 << 20), 100 << 20))

    out = pl.pallas_call(
        functools.partial(sublayer_connection_kernel,
                          eps=eps, sublayer_fn=sublayer_fn),
        out_shape=jax.ShapeDtypeStruct((N, D), x.dtype),
        grid=grid,
        in_specs=[
            pl.BlockSpec((tm, D), lambda i: (i, 0)),   # x row tile
            pl.BlockSpec((1, D), lambda i: (0, 0)),    # a_2 (resident)
            pl.BlockSpec((1, D), lambda i: (0, 0)),    # b_2 (resident)
            *param_specs,                              # sublayer params (resident)
        ],
        out_specs=pl.BlockSpec((tm, D), lambda i: (i, 0)),
        compiler_params=pltpu.CompilerParams(
            dimension_semantics=("parallel",),         # shards rows across v7x TCs
            vmem_limit_bytes=vmem_budget),
    )(x2, a2, b2, *sublayer_params)

    return out.reshape(orig_shape)


if __name__ == "__main__":
    # Small shapes consistent with the module: batch=2, seq=8, size (d_model)=32.
    batch, seq, size = 2, 8, 32

    key = jax.random.PRNGKey(0)
    kx, kg, kh = jax.random.split(key, 3)

    x = jax.random.normal(kx, (batch, seq, size), dtype=jnp.float32)
    # LayerNorm parameters (PyTorch init: a_2 = ones, b_2 = zeros).
    a_2 = jnp.ones((size,), jnp.float32)
    b_2 = jnp.zeros((size,), jnp.float32)

    # Example "sublayer": per-feature affine followed by GELU, applied
    # row-wise inside the fused kernel. Any row-wise JAX fn + parameter
    # arrays plugs in through the same interface.
    g = 1.0 + 0.1 * jax.random.normal(kg, (1, size), dtype=jnp.float32)
    h = 0.1 * jax.random.normal(kh, (1, size), dtype=jnp.float32)

    def sublayer_fn(y, gg, hh):
        return jax.nn.gelu(y * gg + hh)

    out = sublayer_connection_forward(x, a_2, b_2, sublayer_fn, (g, h))
    out = jax.block_until_ready(out)

    # Reference: plain-JAX equivalent of the PyTorch forward (eval-mode dropout).
    mean = jnp.mean(x, axis=-1, keepdims=True)
    std = jnp.std(x, axis=-1, keepdims=True, ddof=1)   # torch std is unbiased
    normed = a_2 * (x - mean) / (std + 1e-6) + b_2
    ref = x + sublayer_fn(normed, g, h)

    assert out.shape == x.shape
    assert jnp.allclose(out, ref, rtol=1e-5, atol=1e-5)

    print("KERNEL_OK")
</pallas_src>

<mosaic_0001>
module attributes {stable_mosaic.version = 11 : i64} {
  func.func @sublayer_connection_kernel(%arg0: i32, %arg1: memref<16x32xf32, #tpu.memory_space<vmem>>, %arg2: memref<1x32xf32, #tpu.memory_space<vmem>>, %arg3: memref<1x32xf32, #tpu.memory_space<vmem>>, %arg4: memref<1x32xf32, #tpu.memory_space<vmem>>, %arg5: memref<1x32xf32, #tpu.memory_space<vmem>>, %arg6: memref<16x32xf32, #tpu.memory_space<vmem>>) attributes {dimension_semantics = [#tpu.dimension_semantics<parallel>], iteration_bounds = array<i64: 1>, scalar_prefetch = 0 : i64, scratch_operands = 0 : i64, tpu.core_type = #tpu.core_type<tc>, window_params = [{transform_indices = @transform_0, window_bounds = array<i64: 16, 32>}, {pipeline_mode = #tpu.pipeline_mode<synchronous>, transform_indices = @transform_1, window_bounds = array<i64: 1, 32>}, {pipeline_mode = #tpu.pipeline_mode<synchronous>, transform_indices = @transform_2, window_bounds = array<i64: 1, 32>}, {pipeline_mode = #tpu.pipeline_mode<synchronous>, transform_indices = @transform_3, window_bounds = array<i64: 1, 32>}, {pipeline_mode = #tpu.pipeline_mode<synchronous>, transform_indices = @transform_4, window_bounds = array<i64: 1, 32>}, {transform_indices = @transform_5, window_bounds = array<i64: 16, 32>}]} {
    %c0 = arith.constant 0 : index
    %c0_0 = arith.constant 0 : index
    %0 = vector.load %arg1[%c0, %c0_0] : memref<16x32xf32, #tpu.memory_space<vmem>>, vector<16x32xf32>
    %cst = arith.constant dense<0.000000e+00> : vector<16xf32>
    %1 = vector.multi_reduction <add>, %0, %cst [1] : vector<16x32xf32> to vector<16xf32>
    %2 = vector.shape_cast %1 : vector<16xf32> to vector<16x1xf32>
    %cst_1 = arith.constant 3.200000e+01 : f32
    %3 = vector.broadcast %cst_1 : f32 to vector<16x1xf32>
    %4 = arith.divf %2, %3 : vector<16x1xf32>
    %5 = vector.broadcast %4 : vector<16x1xf32> to vector<16x32xf32>
    %6 = arith.subf %0, %5 : vector<16x32xf32>
    %7 = arith.mulf %6, %6 : vector<16x32xf32>
    %cst_2 = arith.constant dense<0.000000e+00> : vector<16xf32>
    %8 = vector.multi_reduction <add>, %7, %cst_2 [1] : vector<16x32xf32> to vector<16xf32>
    %9 = vector.shape_cast %8 : vector<16xf32> to vector<16x1xf32>
    %cst_3 = arith.constant 0.0322580636 : f32
    %10 = vector.broadcast %cst_3 : f32 to vector<16x1xf32>
    %11 = arith.mulf %9, %10 : vector<16x1xf32>
    %12 = math.sqrt %11 : vector<16x1xf32>
    %c0_4 = arith.constant 0 : index
    %c0_5 = arith.constant 0 : index
    %13 = vector.load %arg2[%c0_4, %c0_5] : memref<1x32xf32, #tpu.memory_space<vmem>>, vector<1x32xf32>
    %14 = vector.broadcast %13 : vector<1x32xf32> to vector<16x32xf32>
    %15 = arith.mulf %14, %6 : vector<16x32xf32>
    %cst_6 = arith.constant 9.99999997E-7 : f32
    %16 = vector.broadcast %cst_6 : f32 to vector<16x1xf32>
    %17 = arith.addf %12, %16 : vector<16x1xf32>
    %18 = vector.broadcast %17 : vector<16x1xf32> to vector<16x32xf32>
    %19 = arith.divf %15, %18 : vector<16x32xf32>
    %c0_7 = arith.constant 0 : index
    %c0_8 = arith.constant 0 : index
    %20 = vector.load %arg3[%c0_7, %c0_8] : memref<1x32xf32, #tpu.memory_space<vmem>>, vector<1x32xf32>
    %21 = vector.broadcast %20 : vector<1x32xf32> to vector<16x32xf32>
    %22 = arith.addf %19, %21 : vector<16x32xf32>
    %c0_9 = arith.constant 0 : index
    %c0_10 = arith.constant 0 : index
    %23 = vector.load %arg4[%c0_9, %c0_10] : memref<1x32xf32, #tpu.memory_space<vmem>>, vector<1x32xf32>
    %c0_11 = arith.constant 0 : index
    %c0_12 = arith.constant 0 : index
    %24 = vector.load %arg5[%c0_11, %c0_12] : memref<1x32xf32, #tpu.memory_space<vmem>>, vector<1x32xf32>
    %25 = vector.broadcast %23 : vector<1x32xf32> to vector<16x32xf32>
    %26 = arith.mulf %22, %25 : vector<16x32xf32>
    %27 = vector.broadcast %24 : vector<1x32xf32> to vector<16x32xf32>
    %28 = arith.addf %26, %27 : vector<16x32xf32>
    %29 = arith.mulf %28, %28 : vector<16x32xf32>
    %30 = arith.mulf %28, %29 : vector<16x32xf32>
    %cst_13 = arith.constant 4.471500e-02 : f32
    %31 = vector.broadcast %cst_13 : f32 to vector<16x32xf32>
    %32 = arith.mulf %31, %30 : vector<16x32xf32>
    %33 = arith.addf %28, %32 : vector<16x32xf32>
    %cst_14 = arith.constant 0.797884583 : f32
    %34 = vector.broadcast %cst_14 : f32 to vector<16x32xf32>
    %35 = arith.mulf %34, %33 : vector<16x32xf32>
    %36 = math.tanh %35 : vector<16x32xf32>
    %cst_15 = arith.constant 1.000000e+00 : f32
    %37 = vector.broadcast %cst_15 : f32 to vector<16x32xf32>
    %38 = arith.addf %37, %36 : vector<16x32xf32>
    %cst_16 = arith.constant 5.000000e-01 : f32
    %39 = vector.broadcast %cst_16 : f32 to vector<16x32xf32>
    %40 = arith.mulf %39, %38 : vector<16x32xf32>
    %41 = arith.mulf %28, %40 : vector<16x32xf32>
    %42 = arith.addf %0, %41 : vector<16x32xf32>
    %c0_17 = arith.constant 0 : index
    %c0_18 = arith.constant 0 : index
    %43 = vector.load %arg6[%c0_17, %c0_18] : memref<16x32xf32, #tpu.memory_space<vmem>>, vector<16x32xf32>
    tpu.vector_store %arg6[%c0_17, %c0_18], %42 {strides = array<i32>} : memref<16x32xf32, #tpu.memory_space<vmem>>, vector<16x32xf32>,
    return
  }
  func.func @transform_0(%arg0: i32) -> (i32, i32) {
    %c0_i32 = arith.constant 0 : i32
    %c0_i32_0 = arith.constant 0 : i32
    return %arg0, %c0_i32 : i32, i32
  }
  func.func @transform_1(%arg0: i32) -> (i32, i32) {
    %c0_i32 = arith.constant 0 : i32
    %c0_i32_0 = arith.constant 0 : i32
    %c0_i32_1 = arith.constant 0 : i32
    return %c0_i32, %c0_i32_0 : i32, i32
  }
  func.func @transform_2(%arg0: i32) -> (i32, i32) {
    %c0_i32 = arith.constant 0 : i32
    %c0_i32_0 = arith.constant 0 : i32
    %c0_i32_1 = arith.constant 0 : i32
    return %c0_i32, %c0_i32_0 : i32, i32
  }
  func.func @transform_3(%arg0: i32) -> (i32, i32) {
    %c0_i32 = arith.constant 0 : i32
    %c0_i32_0 = arith.constant 0 : i32
    %c0_i32_1 = arith.constant 0 : i32
    return %c0_i32, %c0_i32_0 : i32, i32
  }
  func.func @transform_4(%arg0: i32) -> (i32, i32) {
    %c0_i32 = arith.constant 0 : i32
    %c0_i32_0 = arith.constant 0 : i32
    %c0_i32_1 = arith.constant 0 : i32
    return %c0_i32, %c0_i32_0 : i32, i32
  }
  func.func @transform_5(%arg0: i32) -> (i32, i32) {
    %c0_i32 = arith.constant 0 : i32
    %c0_i32_0 = arith.constant 0 : i32
    return %arg0, %c0_i32 : i32, i32
  }
}

</mosaic_0001>

<llo_original>
// kernel: tpu_custom_call.1
$region0: #{tpu_custom_call.1}
  #allocation0 [shape = 'u32[]', space=smem, size = 0x4, offset = 0x4, fixed_abs, tag = 'smem constant byte address 0x4 - core index']
  #allocation1 [shape = 'u32[144,128]{1,0:T(1,128)}', space=vmem, size = 0x12000, scoped, tag = 'internal scratch']
  %s0 = inlined_call_operand.hbm [shape: f32[16,32], index: 0, kind: input, shape index: {}]
  %s1 = inlined_call_operand.vmem [shape: f32[1,32], index: 1, kind: input, shape index: {}]
  %s2 = inlined_call_operand.vmem [shape: f32[1,32], index: 2, kind: input, shape index: {}]
  %s3 = inlined_call_operand.vmem [shape: f32[1,32], index: 3, kind: input, shape index: {}]
  %s4 = inlined_call_operand.vmem [shape: f32[1,32], index: 4, kind: input, shape index: {}]
  %s5 = inlined_call_operand.hbm [shape: f32[16,32], index: 5, kind: output, shape index: {}]
  %s6 = sld [smem:[#allocation0]]
  $region34: #{tpu_custom_call.1} parent=0
    _
  %s8 = ssub.s32 1, %s6
  %s9 = scalar_select 0, %s8, %s6
  $region1: #{tpu_custom_call.1} parent=0
    #allocation2 [shape = 'u8[8192]{0}', space=vmem, size = 0x2000, scoped, tag = 'input window, operand 0, single buffered']
    #allocation3 [shape = 's32[1]{0}', space=sflag, size = 0x4, scoped, tag = 'scoped memory for tpu_custom_call.1']
    #allocation4 [shape = 's32[1]{0}', space=sflag, size = 0x4, scoped, tag = 'scoped memory for tpu_custom_call.1']
    #allocation5 [shape = 'u8[8192]{0}', space=vmem, size = 0x2000, scoped, tag = 'output window, operand 0, single buffered']
    %10 = vsyncpa [#allocation3], 0
    %11 = vsyncpa [#allocation4], 0
    // Predicated region
    $region2: #{tpu_custom_call.1} parent=1 // pred_check
      _
    $region3: #{tpu_custom_call.1} parent=1 // pred_check_branch
      %13 = sbr.rel (0) target = $region5
    $region4: #{tpu_custom_call.1} parent=1 // pred_region
      %s15 = ssub.s32 256, 256
      %16 = vsyncadd [#allocation3], %s15
      %s17 = sshll.u32 [#allocation2], 4
      %s18 = int_to_ptr.vmem [resolvable:$true] %s17
      %23 = dma.hbm_to_vmem [thread:$0]  %s0, 256, %s18, [#allocation3], 128, 128, 8
    $region5: #{tpu_custom_call.1} parent=1 // pred_fallthru
      _
    // Predicated region
    $region6: #{tpu_custom_call.1} parent=1 // pred_check
      _
    $region7: #{tpu_custom_call.1} parent=1 // pred_check_branch
      %25 = sbr.rel (0) target = $region9
    $region8: #{tpu_custom_call.1} parent=1 // pred_region
      _
    $region9: #{tpu_custom_call.1} parent=1 // pred_fallthru
      _
    // Predicated region
    $region10: #{tpu_custom_call.1} parent=1 // pred_check
      _
    $region11: #{tpu_custom_call.1} parent=1 // pred_check_branch
      %27 = sbr.rel (0) target = $region13
    $region12: #{tpu_custom_call.1} parent=1 // pred_region
      _
    $region13: #{tpu_custom_call.1} parent=1 // pred_fallthru
      _
    // Predicated region
    $region14: #{tpu_custom_call.1} parent=1 // pred_check
      _
    $region15: #{tpu_custom_call.1} parent=1 // pred_check_branch
      %29 = sbr.rel (0) target = $region17
    $region16: #{tpu_custom_call.1} parent=1 // pred_region
      _
    $region17: #{tpu_custom_call.1} parent=1 // pred_fallthru
      _
    // Predicated region
    $region18: #{tpu_custom_call.1} parent=1 // pred_check
      _
    $region19: #{tpu_custom_call.1} parent=1 // pred_check_branch
      %31 = sbr.rel (0) target = $region21
    $region20: #{tpu_custom_call.1} parent=1 // pred_region
      _
    $region21: #{tpu_custom_call.1} parent=1 // pred_fallthru
      _
    // Predicated region
    $region22: #{tpu_custom_call.1} parent=1 // pred_check
      _
    $region23: #{tpu_custom_call.1} parent=1 // pred_check_branch
      %33 = sbr.rel (0) target = $region25
    $region24: #{tpu_custom_call.1} parent=1 // pred_region
      %34 = dma.done [#allocation3], 256
    $region25: #{tpu_custom_call.1} parent=1 // pred_fallthru
      _
    %v35 = vld [vmem:[#allocation2] sm:$0xff]
    %v36 = vld [vmem:[#allocation2 + $0x8] sm:$0xff]
    %vm37 = vcmask 261120
    %v38 = vsel %vm37, %v35, 0.0
    %39 = vadd.xlane.f32.xlu0 %v38
    %v40 = vpop.xlane.xlu0 %39
    %v41 = vsel %vm37, %v36, 0.0
    %42 = vadd.xlane.f32.xlu0 %v41
    %v43 = vpop.xlane.xlu0 %42
    %v44 = vrcp.pop 32.0
    %v45 = vmul.f32 %v40, %v44
    %v46 = vmul.f32 %v43, %v44
    %v47 = vsub.f32 %v35, %v45
    %v48 = vsub.f32 %v36, %v46
    %v49 = vmul.f32 %v47, %v47
    %v50 = vmul.f32 %v48, %v48
    %v51 = vsel %vm37, %v49, 0.0
    %52 = vadd.xlane.f32.xlu0 %v51
    %v53 = vpop.xlane.xlu0 %52
    %v54 = vsel %vm37, %v50, 0.0
    %55 = vadd.xlane.f32.xlu0 %v54
    %v56 = vpop.xlane.xlu0 %55
    %v57 = vmul.f32 %v53, 0.032258064
    %v58 = vmul.f32 %v56, 0.032258064
    %v59 = vrsqrt.pop %v57
    %v60 = vmul.f32 %v57, %v59
    %vm61 = vcmp.eq.f32.partialorder %v57, inf
    %v62 = vsel %vm61, %v57, %v60
    %vm63 = vcmp.eq.f32.partialorder %v57, 0.0
    %v64 = vand.u32 %v57, 2147483648
    %v65 = vsel %vm63, %v64, %v62
    %v66 = vrsqrt.pop %v58
    %v67 = vmul.f32 %v58, %v66
    %vm68 = vcmp.eq.f32.partialorder %v58, inf
    %v69 = vsel %vm68, %v58, %v67
    %vm70 = vcmp.eq.f32.partialorder %v58, 0.0
    %v71 = vand.u32 %v58, 2147483648
    %v72 = vsel %vm70, %v71, %v69
    %v73 = vld [vmem:[%s1] sm:$0x1]
    %v75 = vlaneseq
    %v76 = vshrl.u32 %v75, 7
    %v77 = vsub.s32 0, %v76
    %v78 = vrot.slane %v73, %v77
    %v80 = vmul.f32 %v78, %v47
    %v81 = vmul.f32 %v78, %v48
    %v82 = vadd.f32 %v65, 1e-06
    %v83 = vadd.f32 %v72, 1e-06
    %v84 = vrcp.pop %v82
    %v85 = vmul.f32 %v80, %v84
    %v86 = vrcp.pop %v83
    %v87 = vmul.f32 %v81, %v86
    %v88 = vld [vmem:[%s2] sm:$0x1]
    %v90 = vlaneseq
    %v91 = vshrl.u32 %v90, 7
    %v92 = vsub.s32 0, %v91
    %v93 = vrot.slane %v88, %v92
    %v95 = vadd.f32 %v85, %v93
    %v96 = vadd.f32 %v87, %v93
    %v97 = vld [vmem:[%s3] sm:$0x1]
    %v98 = vld [vmem:[%s4] sm:$0x1]
    %v100 = vlaneseq
    %v101 = vshrl.u32 %v100, 7
    %v102 = vsub.s32 0, %v101
    %v103 = vrot.slane %v97, %v102
    %v105 = vmul.f32 %v95, %v103
    %v106 = vmul.f32 %v96, %v103
    %v108 = vlaneseq
    %v109 = vshrl.u32 %v108, 7
    %v110 = vsub.s32 0, %v109
    %v111 = vrot.slane %v98, %v110
    %v113 = vadd.f32 %v105, %v111
    %v114 = vadd.f32 %v106, %v111
    %v115 = vmul.f32 %v113, %v113
    %v116 = vmul.f32 %v114, %v114
    %v117 = vmul.f32 %v113, %v115
    %v118 = vmul.f32 %v114, %v116
    %v119 = vmul.f32 %v117, 0.044715
    %v120 = vmul.f32 %v118, 0.044715
    %v121 = vadd.f32 %v113, %v119
    %v122 = vadd.f32 %v114, %v120
    %v123 = vmul.f32 %v121, 0.7978846
    %v124 = vmul.f32 %v122, 0.7978846
    %v125 = vtanh.pop %v123
    %v126 = vtanh.pop %v124
    %v127 = vadd.f32 %v125, 1.0
    %v128 = vadd.f32 %v126, 1.0
    %v129 = vmul.f32 %v127, 0.5
    %v130 = vmul.f32 %v128, 0.5
    %v131 = vmul.f32 %v113, %v129
    %v132 = vmul.f32 %v114, %v130
    %v133 = vadd.f32 %v35, %v131
    %v134 = vadd.f32 %v36, %v132
    %135 = vst.msk [vmem:[#allocation5] sm:$0xff] %vm37, %v133
    %136 = vst.msk [vmem:[#allocation5 + $0x8] sm:$0xff] %vm37, %v134
    // Predicated region
    $region26: #{tpu_custom_call.1} parent=1 // pred_check
      _
    $region27: #{tpu_custom_call.1} parent=1 // pred_check_branch
      %138 = sbr.rel (0) target = $region29
    $region28: #{tpu_custom_call.1} parent=1 // pred_region
      %s140 = ssub.s32 256, 256
      %141 = vsyncadd [#allocation4], %s140
      %s142 = sshll.u32 [#allocation5], 4
      %s143 = int_to_ptr.vmem [resolvable:$true] %s142
      %148 = dma.vmem_to_hbm [thread:$0]  %s143, 256, %s5, [#allocation4], 128, 128, 8
    $region29: #{tpu_custom_call.1} parent=1 // pred_fallthru
      _
    // Predicated region
    $region30: #{tpu_custom_call.1} parent=1 // pred_check
      _
    $region31: #{tpu_custom_call.1} parent=1 // pred_check_branch
      %150 = sbr.rel (0) target = $region33
    $region32: #{tpu_custom_call.1} parent=1 // pred_region
      %151 = dma.done [#allocation4], 256
    $region33: #{tpu_custom_call.1} parent=1 // pred_fallthru
      _
    %152 = vsyncpa [#allocation3], 1
    %153 = vsyncpa [#allocation4], 1

</llo_original>
